<compile_context>
chip_gen: v7x
topology: tpu7x:2x2x1
jax: 0.10.0
libtpu: 0.0.40
codegen_flags: <defaults>
</compile_context>

<pallas_src>
import math

import jax
import jax.numpy as jnp
from jax.experimental import pallas as pl
from jax.experimental.pallas import tpu as pltpu


def _make_rnn_kernel(inp_pad: int, hid: int, b_pad: int, tb: int):
    """Phase A: recurrent kernel over grid=(T_PAD // tb,), time axis serial."""

    def kernel(
        x_ref,       # (tb*b_pad, inp_pad)       f32  padded inputs (+ constant-1 bias lane)
        h0_ref,      # (b_pad, hid)              f32  initial hidden state (resident)
        w_ref,       # (inp_pad + hid, hid)      f32  [W_ih_pad (with bias row); W_hh]
        hseq_ref,    # (tb*b_pad, hid)           f32  output: hidden states of this block
        h_scr,       # VMEM (b_pad, hid)         f32  hidden-state carry across blocks
    ):
        @pl.when(pl.program_id(0) == 0)
        def _init():
            h_scr[...] = h0_ref[...]

        w_ih = w_ref[0:inp_pad, :]               # includes merged (b_ih+b_hh) row
        w_hh = w_ref[inp_pad:inp_pad + hid, :]

        # Whole-block input projection: ONE MXU launch with M = tb*b_pad rows.
        # (Biases are folded in through the constant-1 lane of x.)
        hseq_ref[...] = jnp.dot(x_ref[...], w_ih, preferred_element_type=jnp.float32)

        # Serial recurrence: one small dot per step, fully unrolled.
        h = h_scr[...]
        for i in range(tb):
            rows = slice(i * b_pad, (i + 1) * b_pad)
            pre = hseq_ref[rows, :] + jnp.dot(h, w_hh, preferred_element_type=jnp.float32)
            h = jnp.maximum(pre, 0.0)
            hseq_ref[rows, :] = h
        h_scr[...] = h

    return kernel


def _make_mlp_kernel(hid: int):
    """Phase B: out_layer (Dropout(eval)=id -> Linear -> ReLU -> Linear), batched rows."""

    def kernel(
        h_ref,       # (tm, hid)        f32  hidden states (rows of T*B)
        w_ref,       # (2*hid, hid)     f32  [W1; W2_pad]
        b_ref,       # (8, hid)         f32  rows: b1, b2_pad
        kin_ref,     # (tm, hid)        f32  lane-dense kin (padded OUT)
    ):
        w1 = w_ref[0:hid, :]
        w2 = w_ref[hid:2 * hid, :]
        z1 = jnp.maximum(
            jnp.dot(h_ref[...], w1, preferred_element_type=jnp.float32) + b_ref[0:1, :],
            0.0,
        )
        kin_ref[...] = (
            jnp.dot(z1, w2, preferred_element_type=jnp.float32) + b_ref[1:2, :]
        )

    return kernel


def baseline_rnn_sequence(inp_seq, h0, params):
    """Run T recurrent steps (phase A) + batched MLP head (phase B).

    inp_seq: (T, B, inp_size) f32
    h0     : (B, n_neurons)   f32
    Returns (kin_seq (T, B, out_size), h_final (B, n_neurons)).

    Larger B is essentially free up to the MXU height (128/256 rows); callers
    should batch as many sequences per call as possible.
    """
    T, B, INP = inp_seq.shape
    HID = h0.shape[1]
    OUT = params["w2"].shape[1]

    INP_PAD = 128                               # lane-aligned x (+ room for the bias lane)
    B_PAD = max(8, int(math.ceil(B / 8) * 8))   # sublane-aligned batch
    OUT_PAD = HID                               # lane-dense kin output, narrowed later
    TB = 16 if T >= 16 else 8                   # time steps per grid step
    T_PAD = int(math.ceil(T / TB) * TB)
    M = T_PAD * B_PAD                           # total rows streamed through phase B
    assert HID % 128 == 0 and OUT <= OUT_PAD and INP + 1 <= INP_PAD

    # ---- phase-A operands: padded input with a constant-1 bias lane -------------
    x = jnp.zeros((T_PAD, B_PAD, INP_PAD), jnp.float32)
    x = x.at[:T, :B, :INP].set(inp_seq.astype(jnp.float32))
    x = x.at[:, :, INP].set(1.0)                             # bias lane
    x2d = x.reshape(M, INP_PAD)

    h0p = jnp.zeros((B_PAD, HID), jnp.float32).at[:B, :].set(h0)

    w_ih_pad = jnp.zeros((INP_PAD, HID), jnp.float32).at[:INP, :].set(params["w_ih"])
    w_ih_pad = w_ih_pad.at[INP, :].set((params["b_ih"] + params["b_hh"]).reshape(HID))
    w_rnn = jnp.concatenate([w_ih_pad, params["w_hh"]], axis=0)   # (INP_PAD+HID, HID)

    rnn_kernel = _make_rnn_kernel(INP_PAD, HID, B_PAD, TB)
    h_seq = pl.pallas_call(
        rnn_kernel,
        out_shape=jax.ShapeDtypeStruct((M, HID), jnp.float32),
        grid_spec=pltpu.PrefetchScalarGridSpec(
            num_scalar_prefetch=0,
            grid=(T_PAD // TB,),
            in_specs=[
                pl.BlockSpec((TB * B_PAD, INP_PAD), lambda t: (t, 0)),   # streamed x
                pl.BlockSpec((B_PAD, HID), lambda t: (0, 0)),            # h0 (resident)
                pl.BlockSpec((INP_PAD + HID, HID), lambda t: (0, 0)),    # packed W (resident)
            ],
            out_specs=pl.BlockSpec((TB * B_PAD, HID), lambda t: (t, 0)),  # h_seq per block
            scratch_shapes=[pltpu.VMEM((B_PAD, HID), jnp.float32)],
        ),
        compiler_params=pltpu.CompilerParams(
            dimension_semantics=("arbitrary",),   # true recurrence: serial time axis
        ),
    )(x2d, h0p, w_rnn)

    # ---- phase-B operands --------------------------------------------------------
    w2_pad = jnp.zeros((HID, OUT_PAD), jnp.float32).at[:, :OUT].set(params["w2"])
    w_mlp = jnp.concatenate([params["w1"], w2_pad], axis=0)      # (2*HID, OUT_PAD)
    b_mlp = jnp.zeros((8, OUT_PAD), jnp.float32)
    b_mlp = b_mlp.at[0, :].set(params["b1"].reshape(HID))
    b_mlp = b_mlp.at[1, :OUT].set(params["b2"].reshape(OUT))

    TM = next(t for t in (512, 256, 128, 64) if M % t == 0)      # M is a multiple of 64
    mlp_kernel = _make_mlp_kernel(HID)
    kin2d = pl.pallas_call(
        mlp_kernel,
        out_shape=jax.ShapeDtypeStruct((M, OUT_PAD), jnp.float32),
        grid_spec=pltpu.PrefetchScalarGridSpec(
            num_scalar_prefetch=0,
            grid=(M // TM,),
            in_specs=[
                pl.BlockSpec((TM, HID), lambda m: (m, 0)),               # h_seq rows
                pl.BlockSpec((2 * HID, OUT_PAD), lambda m: (0, 0)),      # packed W (resident)
                pl.BlockSpec((8, OUT_PAD), lambda m: (0, 0)),            # packed b (resident)
            ],
            out_specs=pl.BlockSpec((TM, OUT_PAD), lambda m: (m, 0)),
        ),
        compiler_params=pltpu.CompilerParams(
            dimension_semantics=("parallel",),    # non-recurrent: shard across TCs on v7x
        ),
    )(h_seq, w_mlp, b_mlp)

    kin_seq = kin2d.reshape(T_PAD, B_PAD, OUT_PAD)[:T, :B, :OUT]
    h_final = h_seq.reshape(T_PAD, B_PAD, HID)[T - 1, :B, :]
    return kin_seq, h_final


def baseline_rnn_forward(inp, h_old, params):
    """Single-step forward, exactly matching BaselineRNN.forward(inp, h_old)."""
    kin_seq, h_new = baseline_rnn_sequence(inp[None], h_old, params)
    return kin_seq[0], h_new


def init_params(key, inp_size, n_neurons, out_size):
    """Deterministic PyTorch-style uniform(-1/sqrt(fan), 1/sqrt(fan)) init.

    Weights are stored pre-transposed as (in_features, out_features)."""
    ks = jax.random.split(key, 8)

    def unif(k, shape, fan):
        bound = 1.0 / math.sqrt(fan)
        return jax.random.uniform(k, shape, jnp.float32, -bound, bound)

    w_ih = unif(ks[0], (inp_size, n_neurons), n_neurons)
    w_hh = unif(ks[1], (n_neurons, n_neurons), n_neurons)
    b_ih = unif(ks[2], (1, n_neurons), n_neurons)
    b_hh = unif(ks[3], (1, n_neurons), n_neurons)
    w1 = unif(ks[4], (n_neurons, n_neurons), n_neurons)
    b1 = unif(ks[5], (1, n_neurons), n_neurons)
    w2 = unif(ks[6], (n_neurons, out_size), n_neurons)
    b2 = unif(ks[7], (1, out_size), n_neurons)
    return dict(w_ih=w_ih, b_ih=b_ih, w_hh=w_hh, b_hh=b_hh,
                w1=w1, b1=b1, w2=w2, b2=b2)


def reference_forward(inp, h_old, p):
    h_new = jnp.maximum(inp @ p["w_ih"] + p["b_ih"] + h_old @ p["w_hh"] + p["b_hh"], 0.0)
    z1 = jnp.maximum(h_new @ p["w1"] + p["b1"], 0.0)
    kin = z1 @ p["w2"] + p["b2"]
    return kin, h_new


if __name__ == "__main__":
    T, B, INP, HID, OUT = 8, 8, 3, 128, 6

    key = jax.random.PRNGKey(0)
    k_inp, k_h, k_params = jax.random.split(key, 3)

    inp_seq = jax.random.normal(k_inp, (T, B, INP), jnp.float32)
    h0 = jax.random.normal(k_h, (B, HID), jnp.float32)
    params = init_params(k_params, INP, HID, OUT)

    # --- single-step check (exact BaselineRNN.forward semantics) -----------------
    kin1, h1 = baseline_rnn_forward(inp_seq[0], h0, params)
    jax.block_until_ready((kin1, h1))
    kin1_ref, h1_ref = reference_forward(inp_seq[0], h0, params)
    assert kin1.shape == (B, OUT) and h1.shape == (B, HID)
    assert jnp.allclose(kin1, kin1_ref, atol=1e-4, rtol=1e-4)
    assert jnp.allclose(h1, h1_ref, atol=1e-4, rtol=1e-4)

    # --- full-sequence check (recurrence + hoisted MLP head) ---------------------
    kin_seq, h_final = baseline_rnn_sequence(inp_seq, h0, params)
    jax.block_until_ready((kin_seq, h_final))

    h_ref = h0
    kin_refs = []
    for t in range(T):
        kin_t, h_ref = reference_forward(inp_seq[t], h_ref, params)
        kin_refs.append(kin_t)
    kin_ref_seq = jnp.stack(kin_refs, axis=0)

    assert kin_seq.shape == (T, B, OUT) and h_final.shape == (B, HID)
    assert jnp.allclose(kin_seq, kin_ref_seq, atol=1e-4, rtol=1e-4)
    assert jnp.allclose(h_final, h_ref, atol=1e-4, rtol=1e-4)

    print("KERNEL_OK")
</pallas_src>

<mosaic_0001>
module attributes {stable_mosaic.version = 11 : i64} {
  func.func @kernel(%arg0: i32, %arg1: memref<64x128xf32, #tpu.memory_space<vmem>>, %arg2: memref<8x128xf32, #tpu.memory_space<vmem>>, %arg3: memref<256x128xf32, #tpu.memory_space<vmem>>, %arg4: memref<64x128xf32, #tpu.memory_space<vmem>>, %arg5: memref<8x128xf32, #tpu.memory_space<vmem>>) attributes {dimension_semantics = [#tpu.dimension_semantics<arbitrary>], iteration_bounds = array<i64: 1>, scalar_prefetch = 0 : i64, scratch_operands = 1 : i64, tpu.core_type = #tpu.core_type<tc>, window_params = [{transform_indices = @transform_0, window_bounds = array<i64: 64, 128>}, {pipeline_mode = #tpu.pipeline_mode<synchronous>, transform_indices = @transform_1, window_bounds = array<i64: 8, 128>}, {pipeline_mode = #tpu.pipeline_mode<synchronous>, transform_indices = @transform_2, window_bounds = array<i64: 256, 128>}, {transform_indices = @transform_3, window_bounds = array<i64: 64, 128>}]} {
    %c0_i32 = arith.constant 0 : i32
    %0 = arith.cmpi eq, %arg0, %c0_i32 : i32
    %1 = arith.extui %0 : i1 to i32
    %c0_i32_0 = arith.constant 0 : i32
    %2 = arith.cmpi ne, %1, %c0_i32_0 : i32
    scf.if %2 {
      %c0_52 = arith.constant 0 : index
      %c0_53 = arith.constant 0 : index
      %58 = vector.load %arg2[%c0_52, %c0_53] : memref<8x128xf32, #tpu.memory_space<vmem>>, vector<8x128xf32>
      %c0_54 = arith.constant 0 : index
      %c0_55 = arith.constant 0 : index
      %59 = vector.load %arg5[%c0_54, %c0_55] : memref<8x128xf32, #tpu.memory_space<vmem>>, vector<8x128xf32>
      tpu.vector_store %arg5[%c0_54, %c0_55], %58 {strides = array<i32>} : memref<8x128xf32, #tpu.memory_space<vmem>>, vector<8x128xf32>,
    } else {
    }
    %c0 = arith.constant 0 : index
    %c0_1 = arith.constant 0 : index
    %3 = vector.load %arg3[%c0, %c0_1] : memref<256x128xf32, #tpu.memory_space<vmem>>, vector<128x128xf32>
    %c128 = arith.constant 128 : index
    %c0_2 = arith.constant 0 : index
    %4 = vector.load %arg3[%c128, %c0_2] : memref<256x128xf32, #tpu.memory_space<vmem>>, vector<128x128xf32>
    %c0_3 = arith.constant 0 : index
    %c0_4 = arith.constant 0 : index
    %5 = vector.load %arg1[%c0_3, %c0_4] : memref<64x128xf32, #tpu.memory_space<vmem>>, vector<64x128xf32>
    %cst = arith.constant dense<0.000000e+00> : vector<64x128xf32>
    %6 = tpu.matmul %5, %3, %cst {dimension_numbers = #tpu.dot_dimension_numbers<[1], [0], [0], [1], [0, 0, 1, 1], [], []>} : vector<64x128xf32>, vector<128x128xf32>, vector<64x128xf32> -> vector<64x128xf32>
    %c0_5 = arith.constant 0 : index
    %c0_6 = arith.constant 0 : index
    %7 = vector.load %arg4[%c0_5, %c0_6] : memref<64x128xf32, #tpu.memory_space<vmem>>, vector<64x128xf32>
    tpu.vector_store %arg4[%c0_5, %c0_6], %6 {strides = array<i32>} : memref<64x128xf32, #tpu.memory_space<vmem>>, vector<64x128xf32>,
    %c0_7 = arith.constant 0 : index
    %c0_8 = arith.constant 0 : index
    %8 = vector.load %arg5[%c0_7, %c0_8] : memref<8x128xf32, #tpu.memory_space<vmem>>, vector<8x128xf32>
    %c0_9 = arith.constant 0 : index
    %c0_10 = arith.constant 0 : index
    %9 = vector.load %arg4[%c0_9, %c0_10] : memref<64x128xf32, #tpu.memory_space<vmem>>, vector<8x128xf32>
    %cst_11 = arith.constant dense<0.000000e+00> : vector<8x128xf32>
    %10 = tpu.matmul %8, %4, %cst_11 {dimension_numbers = #tpu.dot_dimension_numbers<[1], [0], [0], [1], [0, 0, 1, 1], [], []>} : vector<8x128xf32>, vector<128x128xf32>, vector<8x128xf32> -> vector<8x128xf32>
    %11 = arith.addf %9, %10 : vector<8x128xf32>
    %cst_12 = arith.constant 0.000000e+00 : f32
    %12 = vector.broadcast %cst_12 : f32 to vector<8x128xf32>
    %13 = arith.maximumf %11, %12 : vector<8x128xf32>
    %c0_13 = arith.constant 0 : index
    %c0_14 = arith.constant 0 : index
    %14 = vector.load %arg4[%c0_13, %c0_14] : memref<64x128xf32, #tpu.memory_space<vmem>>, vector<8x128xf32>
    tpu.vector_store %arg4[%c0_13, %c0_14], %13 {strides = array<i32>} : memref<64x128xf32, #tpu.memory_space<vmem>>, vector<8x128xf32>,
    %c8 = arith.constant 8 : index
    %c0_15 = arith.constant 0 : index
    %15 = vector.load %arg4[%c8, %c0_15] : memref<64x128xf32, #tpu.memory_space<vmem>>, vector<8x128xf32>
    %cst_16 = arith.constant dense<0.000000e+00> : vector<8x128xf32>
    %16 = tpu.matmul %13, %4, %cst_16 {dimension_numbers = #tpu.dot_dimension_numbers<[1], [0], [0], [1], [0, 0, 1, 1], [], []>} : vector<8x128xf32>, vector<128x128xf32>, vector<8x128xf32> -> vector<8x128xf32>
    %17 = arith.addf %15, %16 : vector<8x128xf32>
    %cst_17 = arith.constant 0.000000e+00 : f32
    %18 = vector.broadcast %cst_17 : f32 to vector<8x128xf32>
    %19 = arith.maximumf %17, %18 : vector<8x128xf32>
    %c8_18 = arith.constant 8 : index
    %c0_19 = arith.constant 0 : index
    %20 = vector.load %arg4[%c8_18, %c0_19] : memref<64x128xf32, #tpu.memory_space<vmem>>, vector<8x128xf32>
    tpu.vector_store %arg4[%c8_18, %c0_19], %19 {strides = array<i32>} : memref<64x128xf32, #tpu.memory_space<vmem>>, vector<8x128xf32>,
    %c16 = arith.constant 16 : index
    %c0_20 = arith.constant 0 : index
    %21 = vector.load %arg4[%c16, %c0_20] : memref<64x128xf32, #tpu.memory_space<vmem>>, vector<8x128xf32>
    %cst_21 = arith.constant dense<0.000000e+00> : vector<8x128xf32>
    %22 = tpu.matmul %19, %4, %cst_21 {dimension_numbers = #tpu.dot_dimension_numbers<[1], [0], [0], [1], [0, 0, 1, 1], [], []>} : vector<8x128xf32>, vector<128x128xf32>, vector<8x128xf32> -> vector<8x128xf32>
    %23 = arith.addf %21, %22 : vector<8x128xf32>
    %cst_22 = arith.constant 0.000000e+00 : f32
    %24 = vector.broadcast %cst_22 : f32 to vector<8x128xf32>
    %25 = arith.maximumf %23, %24 : vector<8x128xf32>
    %c16_23 = arith.constant 16 : index
    %c0_24 = arith.constant 0 : index
    %26 = vector.load %arg4[%c16_23, %c0_24] : memref<64x128xf32, #tpu.memory_space<vmem>>, vector<8x128xf32>
    tpu.vector_store %arg4[%c16_23, %c0_24], %25 {strides = array<i32>} : memref<64x128xf32, #tpu.memory_space<vmem>>, vector<8x128xf32>,
    %c24 = arith.constant 24 : index
    %c0_25 = arith.constant 0 : index
    %27 = vector.load %arg4[%c24, %c0_25] : memref<64x128xf32, #tpu.memory_space<vmem>>, vector<8x128xf32>
    %cst_26 = arith.constant dense<0.000000e+00> : vector<8x128xf32>
    %28 = tpu.matmul %25, %4, %cst_26 {dimension_numbers = #tpu.dot_dimension_numbers<[1], [0], [0], [1], [0, 0, 1, 1], [], []>} : vector<8x128xf32>, vector<128x128xf32>, vector<8x128xf32> -> vector<8x128xf32>
    %29 = arith.addf %27, %28 : vector<8x128xf32>
    %cst_27 = arith.constant 0.000000e+00 : f32
    %30 = vector.broadcast %cst_27 : f32 to vector<8x128xf32>
    %31 = arith.maximumf %29, %30 : vector<8x128xf32>
    %c24_28 = arith.constant 24 : index
    %c0_29 = arith.constant 0 : index
    %32 = vector.load %arg4[%c24_28, %c0_29] : memref<64x128xf32, #tpu.memory_space<vmem>>, vector<8x128xf32>
    tpu.vector_store %arg4[%c24_28, %c0_29], %31 {strides = array<i32>} : memref<64x128xf32, #tpu.memory_space<vmem>>, vector<8x128xf32>,
    %c32 = arith.constant 32 : index
    %c0_30 = arith.constant 0 : index
    %33 = vector.load %arg4[%c32, %c0_30] : memref<64x128xf32, #tpu.memory_space<vmem>>, vector<8x128xf32>
    %cst_31 = arith.constant dense<0.000000e+00> : vector<8x128xf32>
    %34 = tpu.matmul %31, %4, %cst_31 {dimension_numbers = #tpu.dot_dimension_numbers<[1], [0], [0], [1], [0, 0, 1, 1], [], []>} : vector<8x128xf32>, vector<128x128xf32>, vector<8x128xf32> -> vector<8x128xf32>
    %35 = arith.addf %33, %34 : vector<8x128xf32>
    %cst_32 = arith.constant 0.000000e+00 : f32
    %36 = vector.broadcast %cst_32 : f32 to vector<8x128xf32>
    %37 = arith.maximumf %35, %36 : vector<8x128xf32>
    %c32_33 = arith.constant 32 : index
    %c0_34 = arith.constant 0 : index
    %38 = vector.load %arg4[%c32_33, %c0_34] : memref<64x128xf32, #tpu.memory_space<vmem>>, vector<8x128xf32>
    tpu.vector_store %arg4[%c32_33, %c0_34], %37 {strides = array<i32>} : memref<64x128xf32, #tpu.memory_space<vmem>>, vector<8x128xf32>,
    %c40 = arith.constant 40 : index
    %c0_35 = arith.constant 0 : index
    %39 = vector.load %arg4[%c40, %c0_35] : memref<64x128xf32, #tpu.memory_space<vmem>>, vector<8x128xf32>
    %cst_36 = arith.constant dense<0.000000e+00> : vector<8x128xf32>
    %40 = tpu.matmul %37, %4, %cst_36 {dimension_numbers = #tpu.dot_dimension_numbers<[1], [0], [0], [1], [0, 0, 1, 1], [], []>} : vector<8x128xf32>, vector<128x128xf32>, vector<8x128xf32> -> vector<8x128xf32>
    %41 = arith.addf %39, %40 : vector<8x128xf32>
    %cst_37 = arith.constant 0.000000e+00 : f32
    %42 = vector.broadcast %cst_37 : f32 to vector<8x128xf32>
    %43 = arith.maximumf %41, %42 : vector<8x128xf32>
    %c40_38 = arith.constant 40 : index
    %c0_39 = arith.constant 0 : index
    %44 = vector.load %arg4[%c40_38, %c0_39] : memref<64x128xf32, #tpu.memory_space<vmem>>, vector<8x128xf32>
    tpu.vector_store %arg4[%c40_38, %c0_39], %43 {strides = array<i32>} : memref<64x128xf32, #tpu.memory_space<vmem>>, vector<8x128xf32>,
    %c48 = arith.constant 48 : index
    %c0_40 = arith.constant 0 : index
    %45 = vector.load %arg4[%c48, %c0_40] : memref<64x128xf32, #tpu.memory_space<vmem>>, vector<8x128xf32>
    %cst_41 = arith.constant dense<0.000000e+00> : vector<8x128xf32>
    %46 = tpu.matmul %43, %4, %cst_41 {dimension_numbers = #tpu.dot_dimension_numbers<[1], [0], [0], [1], [0, 0, 1, 1], [], []>} : vector<8x128xf32>, vector<128x128xf32>, vector<8x128xf32> -> vector<8x128xf32>
    %47 = arith.addf %45, %46 : vector<8x128xf32>
    %cst_42 = arith.constant 0.000000e+00 : f32
    %48 = vector.broadcast %cst_42 : f32 to vector<8x128xf32>
    %49 = arith.maximumf %47, %48 : vector<8x128xf32>
    %c48_43 = arith.constant 48 : index
    %c0_44 = arith.constant 0 : index
    %50 = vector.load %arg4[%c48_43, %c0_44] : memref<64x128xf32, #tpu.memory_space<vmem>>, vector<8x128xf32>
    tpu.vector_store %arg4[%c48_43, %c0_44], %49 {strides = array<i32>} : memref<64x128xf32, #tpu.memory_space<vmem>>, vector<8x128xf32>,
    %c56 = arith.constant 56 : index
    %c0_45 = arith.constant 0 : index
    %51 = vector.load %arg4[%c56, %c0_45] : memref<64x128xf32, #tpu.memory_space<vmem>>, vector<8x128xf32>
    %cst_46 = arith.constant dense<0.000000e+00> : vector<8x128xf32>
    %52 = tpu.matmul %49, %4, %cst_46 {dimension_numbers = #tpu.dot_dimension_numbers<[1], [0], [0], [1], [0, 0, 1, 1], [], []>} : vector<8x128xf32>, vector<128x128xf32>, vector<8x128xf32> -> vector<8x128xf32>
    %53 = arith.addf %51, %52 : vector<8x128xf32>
    %cst_47 = arith.constant 0.000000e+00 : f32
    %54 = vector.broadcast %cst_47 : f32 to vector<8x128xf32>
    %55 = arith.maximumf %53, %54 : vector<8x128xf32>
    %c56_48 = arith.constant 56 : index
    %c0_49 = arith.constant 0 : index
    %56 = vector.load %arg4[%c56_48, %c0_49] : memref<64x128xf32, #tpu.memory_space<vmem>>, vector<8x128xf32>
    tpu.vector_store %arg4[%c56_48, %c0_49], %55 {strides = array<i32>} : memref<64x128xf32, #tpu.memory_space<vmem>>, vector<8x128xf32>,
    %c0_50 = arith.constant 0 : index
    %c0_51 = arith.constant 0 : index
    %57 = vector.load %arg5[%c0_50, %c0_51] : memref<8x128xf32, #tpu.memory_space<vmem>>, vector<8x128xf32>
    tpu.vector_store %arg5[%c0_50, %c0_51], %55 {strides = array<i32>} : memref<8x128xf32, #tpu.memory_space<vmem>>, vector<8x128xf32>,
    return
  }
  func.func @transform_0(%arg0: i32) -> (i32, i32) {
    %c0_i32 = arith.constant 0 : i32
    %c0_i32_0 = arith.constant 0 : i32
    return %arg0, %c0_i32 : i32, i32
  }
  func.func @transform_1(%arg0: i32) -> (i32, i32) {
    %c0_i32 = arith.constant 0 : i32
    %c0_i32_0 = arith.constant 0 : i32
    %c0_i32_1 = arith.constant 0 : i32
    return %c0_i32, %c0_i32_0 : i32, i32
  }
  func.func @transform_2(%arg0: i32) -> (i32, i32) {
    %c0_i32 = arith.constant 0 : i32
    %c0_i32_0 = arith.constant 0 : i32
    %c0_i32_1 = arith.constant 0 : i32
    return %c0_i32, %c0_i32_0 : i32, i32
  }
  func.func @transform_3(%arg0: i32) -> (i32, i32) {
    %c0_i32 = arith.constant 0 : i32
    %c0_i32_0 = arith.constant 0 : i32
    return %arg0, %c0_i32 : i32, i32
  }
}

</mosaic_0001>

<llo_original>
// kernel: tpu_custom_call.1
$region0: #{tpu_custom_call.1}
  #allocation0 [shape = 'u32[]', space=smem, size = 0x4, offset = 0x4, fixed_abs, tag = 'smem constant byte address 0x4 - core index']
  #allocation1 [shape = 'u32[144,128]{1,0:T(1,128)}', space=vmem, size = 0x12000, scoped, tag = 'internal scratch']
  #allocation2 [shape = 'f32[8,128]{1,0:T(8,128)}', space=vmem, size = 0x1000, scoped, tag = 'scratch operand']
  %s0 = inlined_call_operand.hbm [shape: f32[64,128], index: 0, kind: input, shape index: {}]
  %s1 = inlined_call_operand.hbm [shape: f32[8,128], index: 1, kind: input, shape index: {}]
  %s2 = inlined_call_operand.hbm [shape: f32[256,128], index: 2, kind: input, shape index: {}]
  %s3 = inlined_call_operand.hbm [shape: f32[64,128], index: 3, kind: output, shape index: {}]
  %s4 = sld [smem:[#allocation0]]
  $region38: #{tpu_custom_call.1} parent=0
    _
  %s6 = ssub.s32 1, %s4
  %s7 = scalar_select 0, %s6, %s4
  $region1: #{tpu_custom_call.1} parent=0
    #allocation3 [shape = 'u8[32768]{0}', space=vmem, size = 0x8000, scoped, tag = 'input window, operand 0, single buffered']
    #allocation4 [shape = 's32[1]{0}', space=sflag, size = 0x4, scoped, tag = 'scoped memory for tpu_custom_call.1']
    #allocation5 [shape = 's32[1]{0}', space=sflag, size = 0x4, scoped, tag = 'scoped memory for tpu_custom_call.1']
    #allocation6 [shape = 'u8[4096]{0}', space=vmem, size = 0x1000, scoped, tag = 'input window, operand 1, single buffered']
    #allocation7 [shape = 's32[1]{0}', space=sflag, size = 0x4, scoped, tag = 'scoped memory for tpu_custom_call.1']
    #allocation8 [shape = 'u8[131072]{0}', space=vmem, size = 0x20000, scoped, tag = 'input window, operand 2, single buffered']
    #allocation9 [shape = 'u8[32768]{0}', space=vmem, size = 0x8000, scoped, tag = 'output window, operand 0, single buffered']
    %8 = vsyncpa [#allocation4], 0
    %9 = vsyncpa [#allocation7], 0
    %10 = vsyncpa [#allocation5], 0
    // Predicated region
    $region2: #{tpu_custom_call.1} parent=1 // pred_check
      _
    $region3: #{tpu_custom_call.1} parent=1 // pred_check_branch
      %12 = sbr.rel (0) target = $region5
    $region4: #{tpu_custom_call.1} parent=1 // pred_region
      %s14 = ssub.s32 1024, 1024
      %15 = vsyncadd [#allocation4], %s14
      %s16 = sshll.u32 [#allocation3], 4
      %s17 = int_to_ptr.vmem [resolvable:$true] %s16
      %22 = dma.hbm_to_vmem [thread:$0]  %s0, 1024, %s17, [#allocation4], 128, 128, 8
    $region5: #{tpu_custom_call.1} parent=1 // pred_fallthru
      _
    // Predicated region
    $region6: #{tpu_custom_call.1} parent=1 // pred_check
      _
    $region7: #{tpu_custom_call.1} parent=1 // pred_check_branch
      %24 = sbr.rel (0) target = $region9
    $region8: #{tpu_custom_call.1} parent=1 // pred_region
      %s26 = ssub.s32 128, 128
      %27 = vsyncadd [#allocation7], %s26
      %s29 = sshll.u32 [#allocation6], 4
      %s30 = int_to_ptr.vmem [resolvable:$true] %s29
      %32 = dma.hbm_to_vmem [thread:$0]  %s1, 128, %s30, [#allocation7]
    $region9: #{tpu_custom_call.1} parent=1 // pred_fallthru
      _
    // Predicated region
    $region10: #{tpu_custom_call.1} parent=1 // pred_check
      _
    $region11: #{tpu_custom_call.1} parent=1 // pred_check_branch
      %34 = sbr.rel (0) target = $region13
    $region12: #{tpu_custom_call.1} parent=1 // pred_region
      %s36 = ssub.s32 4096, 4096
      %37 = vsyncadd [#allocation7], %s36
      %s38 = sshll.u32 [#allocation8], 4
      %s39 = int_to_ptr.vmem [resolvable:$true] %s38
      %44 = dma.hbm_to_vmem [thread:$0]  %s2, 4096, %s39, [#allocation7], 128, 128, 8
    $region13: #{tpu_custom_call.1} parent=1 // pred_fallthru
      _
    // Predicated region
    $region14: #{tpu_custom_call.1} parent=1 // pred_check
      _
    $region15: #{tpu_custom_call.1} parent=1 // pred_check_branch
      %46 = sbr.rel (0) target = $region17
    $region16: #{tpu_custom_call.1} parent=1 // pred_region
      %47 = dma.done [#allocation4], 1024
    $region17: #{tpu_custom_call.1} parent=1 // pred_fallthru
      _
    // Predicated region
    $region18: #{tpu_custom_call.1} parent=1 // pred_check
      _
    $region19: #{tpu_custom_call.1} parent=1 // pred_check_branch
      %49 = sbr.rel (0) target = $region21
    $region20: #{tpu_custom_call.1} parent=1 // pred_region
      %50 = dma.done [#allocation7], 128
    $region21: #{tpu_custom_call.1} parent=1 // pred_fallthru
      _
    // Predicated region
    $region22: #{tpu_custom_call.1} parent=1 // pred_check
      _
    $region23: #{tpu_custom_call.1} parent=1 // pred_check_branch
      %52 = sbr.rel (0) target = $region25
    $region24: #{tpu_custom_call.1} parent=1 // pred_region
      %53 = dma.done [#allocation7], 4096
    $region25: #{tpu_custom_call.1} parent=1 // pred_fallthru
      _
    %p54 = scmp.eq.s32.totalorder 0, 0
    // Predicated region
    $region26: #{tpu_custom_call.1} parent=1 // pred_check
      %p55 = pneg %p54
    $region27: #{tpu_custom_call.1} parent=1 // pred_check_branch
      %57 = sbr.rel (%p55) target = $region29
    $region28: #{tpu_custom_call.1} parent=1 // pred_region
      %v58 = vld [vmem:[#allocation6] sm:$0xff]
      %59 = vst [vmem:[#allocation2] sm:$0xff] %v58
    $region29: #{tpu_custom_call.1} parent=1 // pred_fallthru
      _
    %v60 = vld [vmem:[#allocation8] sm:$0xff]
    %v61 = vld [vmem:[#allocation8 + $0x8] sm:$0xff]
    %v62 = vld [vmem:[#allocation8 + $0x10] sm:$0xff]
    %v63 = vld [vmem:[#allocation8 + $0x18] sm:$0xff]
    %v64 = vld [vmem:[#allocation8 + $0x20] sm:$0xff]
    %v65 = vld [vmem:[#allocation8 + $0x28] sm:$0xff]
    %v66 = vld [vmem:[#allocation8 + $0x30] sm:$0xff]
    %v67 = vld [vmem:[#allocation8 + $0x38] sm:$0xff]
    %v68 = vld [vmem:[#allocation8 + $0x40] sm:$0xff]
    %v69 = vld [vmem:[#allocation8 + $0x48] sm:$0xff]
    %v70 = vld [vmem:[#allocation8 + $0x50] sm:$0xff]
    %v71 = vld [vmem:[#allocation8 + $0x58] sm:$0xff]
    %v72 = vld [vmem:[#allocation8 + $0x60] sm:$0xff]
    %v73 = vld [vmem:[#allocation8 + $0x68] sm:$0xff]
    %v74 = vld [vmem:[#allocation8 + $0x70] sm:$0xff]
    %v75 = vld [vmem:[#allocation8 + $0x78] sm:$0xff]
    %v76 = vld [vmem:[#allocation8 + $0x80] sm:$0xff]
    %v77 = vld [vmem:[#allocation8 + $0x88] sm:$0xff]
    %v78 = vld [vmem:[#allocation8 + $0x90] sm:$0xff]
    %v79 = vld [vmem:[#allocation8 + $0x98] sm:$0xff]
    %v80 = vld [vmem:[#allocation8 + $0xa0] sm:$0xff]
    %v81 = vld [vmem:[#allocation8 + $0xa8] sm:$0xff]
    %v82 = vld [vmem:[#allocation8 + $0xb0] sm:$0xff]
    %v83 = vld [vmem:[#allocation8 + $0xb8] sm:$0xff]
    %v84 = vld [vmem:[#allocation8 + $0xc0] sm:$0xff]
    %v85 = vld [vmem:[#allocation8 + $0xc8] sm:$0xff]
    %v86 = vld [vmem:[#allocation8 + $0xd0] sm:$0xff]
    %v87 = vld [vmem:[#allocation8 + $0xd8] sm:$0xff]
    %v88 = vld [vmem:[#allocation8 + $0xe0] sm:$0xff]
    %v89 = vld [vmem:[#allocation8 + $0xe8] sm:$0xff]
    %v90 = vld [vmem:[#allocation8 + $0xf0] sm:$0xff]
    %v91 = vld [vmem:[#allocation8 + $0xf8] sm:$0xff]
    %v92 = vld [vmem:[#allocation3] sm:$0xff]
    %v93 = vld [vmem:[#allocation3 + $0x8] sm:$0xff]
    %v94 = vld [vmem:[#allocation3 + $0x10] sm:$0xff]
    %v95 = vld [vmem:[#allocation3 + $0x18] sm:$0xff]
    %v96 = vld [vmem:[#allocation3 + $0x20] sm:$0xff]
    %v97 = vld [vmem:[#allocation3 + $0x28] sm:$0xff]
    %v98 = vld [vmem:[#allocation3 + $0x30] sm:$0xff]
    %v99 = vld [vmem:[#allocation3 + $0x38] sm:$0xff]
    %100 = vmatprep.subr.mxu0 0.0
    %101 = vmatpush1.msra.mxu0 %v60
    %102 = vmatprep.subr.mxu0 0.0
    %103 = vmatpush1.msra.mxu0 %v61
    %104 = vmatprep.subr.mxu0 0.0
    %105 = vmatpush1.msra.mxu0 %v62
    %106 = vmatprep.subr.mxu0 0.0
    %107 = vmatpush1.msra.mxu0 %v63
    %108 = vmatprep.subr.mxu0 0.0
    %109 = vmatpush1.msra.mxu0 %v64
    %110 = vmatprep.subr.mxu0 0.0
    %111 = vmatpush1.msra.mxu0 %v65
    %112 = vmatprep.subr.mxu0 0.0
    %113 = vmatpush1.msra.mxu0 %v66
    %114 = vmatprep.subr.mxu0 0.0
    %115 = vmatpush1.msra.mxu0 %v67
    %116 = vmatprep.subr.mxu0 0.0
    %117 = vmatpush1.msra.mxu0 %v68
    %118 = vmatprep.subr.mxu0 0.0
    %119 = vmatpush1.msra.mxu0 %v69
    %120 = vmatprep.subr.mxu0 0.0
    %121 = vmatpush1.msra.mxu0 %v70
    %122 = vmatprep.subr.mxu0 0.0
    %123 = vmatpush1.msra.mxu0 %v71
    %124 = vmatprep.subr.mxu0 0.0
    %125 = vmatpush1.msra.mxu0 %v72
    %126 = vmatprep.subr.mxu0 0.0
    %127 = vmatpush1.msra.mxu0 %v73
    %128 = vmatprep.subr.mxu0 0.0
    %129 = vmatpush1.msra.mxu0 %v74
    %130 = vmatprep.subr.mxu0 0.0
    %131 = vmatpush1.msra.mxu0 %v75
    %132 = vmatprep.subr.mxu0 0.0
    %133 = vmatpush1.msra.mxu0 0.0
    %134 = vmatprep.subr.mxu0 0.0
    %135 = vmatpush1.msra.mxu0 0.0
    %136 = vmatprep.subr.mxu0 0.0
    %137 = vmatpush1.msra.mxu0 0.0
    %138 = vmatprep.subr.mxu0 0.0
    %139 = vmatpush1.msra.mxu0 0.0
    %140 = vmatprep.subr.mxu0 0.0
    %141 = vmatpush1.msra.mxu0 0.0
    %142 = vmatprep.subr.mxu0 0.0
    %143 = vmatpush1.msra.mxu0 0.0
    %144 = vmatprep.subr.mxu0 0.0
    %145 = vmatpush1.msra.mxu0 0.0
    %146 = vmatprep.subr.mxu0 0.0
    %147 = vmatpush1.msra.mxu0 0.0
    %148 = vmatprep.subr.mxu0 0.0
    %149 = vmatpush1.msra.mxu0 0.0
    %150 = vmatprep.subr.mxu0 0.0
    %151 = vmatpush1.msra.mxu0 0.0
    %152 = vmatprep.subr.mxu0 0.0
    %153 = vmatpush1.msra.mxu0 0.0
    %154 = vmatprep.subr.mxu0 0.0
    %155 = vmatpush1.msra.mxu0 0.0
    %156 = vmatprep.subr.mxu0 0.0
    %157 = vmatpush1.msra.mxu0 0.0
    %158 = vmatprep.subr.mxu0 0.0
    %159 = vmatpush1.msra.mxu0 0.0
    %160 = vmatprep.subr.mxu0 0.0
    %161 = vmatpush1.msra.mxu0 0.0
    %162 = vmatprep.subr.mxu0 0.0
    %163 = vmatpush1.msra.mxu0 0.0
    %164 = vmatprep.mubr.f32.mxu0 0.0
    %165 = vmatmul.mubr.f32.gmra.mrb[0].mxu0 %v92
    %v166 = vpop.f32.mrb[0].mxu0
    %v167 = vadd.f32 0.0, %v166
    %v168 = vpop.f32.mrb[0].mxu0
    %169 = vmatprep.mubr.f32.mxu0 0.0
    %170 = vmatmul.mubr.f32.gmra.mrb[0].mxu0 %v93
    %v171 = vpop.f32.mrb[0].mxu0
    %v172 = vadd.f32 0.0, %v171
    %v173 = vpop.f32.mrb[0].mxu0
    %174 = vmatprep.mubr.f32.mxu0 0.0
    %175 = vmatmul.mubr.f32.gmra.mrb[0].mxu0 %v94
    %v176 = vpop.f32.mrb[0].mxu0
    %v177 = vadd.f32 0.0, %v176
    %v178 = vpop.f32.mrb[0].mxu0
    %179 = vmatprep.mubr.f32.mxu0 0.0
    %180 = vmatmul.mubr.f32.gmra.mrb[0].mxu0 %v95
    %v181 = vpop.f32.mrb[0].mxu0
    %v182 = vadd.f32 0.0, %v181
    %v183 = vpop.f32.mrb[0].mxu0
    %184 = vmatprep.mubr.f32.mxu0 0.0
    %185 = vmatmul.mubr.f32.gmra.mrb[0].mxu0 %v96
    %v186 = vpop.f32.mrb[0].mxu0
    %v187 = vadd.f32 0.0, %v186
    %v188 = vpop.f32.mrb[0].mxu0
    %189 = vmatprep.mubr.f32.mxu0 0.0
    %190 = vmatmul.mubr.f32.gmra.mrb[0].mxu0 %v97
    %v191 = vpop.f32.mrb[0].mxu0
    %v192 = vadd.f32 0.0, %v191
    %v193 = vpop.f32.mrb[0].mxu0
    %194 = vmatprep.mubr.f32.mxu0 0.0
    %195 = vmatmul.mubr.f32.gmra.mrb[0].mxu0 %v98
    %v196 = vpop.f32.mrb[0].mxu0
    %v197 = vadd.f32 0.0, %v196
    %v198 = vpop.f32.mrb[0].mxu0
    %199 = vmatprep.mubr.f32.mxu0 0.0
    %200 = vmatmul.mubr.f32.gmra.mrb[0].mxu0 %v99
    %v201 = vpop.f32.mrb[0].mxu0
    %v202 = vadd.f32 0.0, %v201
    %v203 = vpop.f32.mrb[0].mxu0
    %204 = vdwg.mxu0
    %205 = vst [vmem:[#allocation9] sm:$0xff] %v167
    %206 = vst [vmem:[#allocation9 + $0x8] sm:$0xff] %v172
    %207 = vst [vmem:[#allocation9 + $0x10] sm:$0xff] %v177
    %208 = vst [vmem:[#allocation9 + $0x18] sm:$0xff] %v182
    %209 = vst [vmem:[#allocation9 + $0x20] sm:$0xff] %v187
    %210 = vst [vmem:[#allocation9 + $0x28] sm:$0xff] %v192
    %211 = vst [vmem:[#allocation9 + $0x30] sm:$0xff] %v197
    %212 = vst [vmem:[#allocation9 + $0x38] sm:$0xff] %v202
    %v213 = vld [vmem:[#allocation2] sm:$0xff]
    %v214 = vld [vmem:[#allocation9] sm:$0xff]
    %215 = vmatprep.subr.mxu0 0.0
    %216 = vmatpush1.msra.mxu0 %v76
    %217 = vmatprep.subr.mxu0 0.0
    %218 = vmatpush1.msra.mxu0 %v77
    %219 = vmatprep.subr.mxu0 0.0
    %220 = vmatpush1.msra.mxu0 %v78
    %221 = vmatprep.subr.mxu0 0.0
    %222 = vmatpush1.msra.mxu0 %v79
    %223 = vmatprep.subr.mxu0 0.0
    %224 = vmatpush1.msra.mxu0 %v80
    %225 = vmatprep.subr.mxu0 0.0
    %226 = vmatpush1.msra.mxu0 %v81
    %227 = vmatprep.subr.mxu0 0.0
    %228 = vmatpush1.msra.mxu0 %v82
    %229 = vmatprep.subr.mxu0 0.0
    %230 = vmatpush1.msra.mxu0 %v83
    %231 = vmatprep.subr.mxu0 0.0
    %232 = vmatpush1.msra.mxu0 %v84
    %233 = vmatprep.subr.mxu0 0.0
    %234 = vmatpush1.msra.mxu0 %v85
    %235 = vmatprep.subr.mxu0 0.0
    %236 = vmatpush1.msra.mxu0 %v86
    %237 = vmatprep.subr.mxu0 0.0
    %238 = vmatpush1.msra.mxu0 %v87
    %239 = vmatprep.subr.mxu0 0.0
    %240 = vmatpush1.msra.mxu0 %v88
    %241 = vmatprep.subr.mxu0 0.0
    %242 = vmatpush1.msra.mxu0 %v89
    %243 = vmatprep.subr.mxu0 0.0
    %244 = vmatpush1.msra.mxu0 %v90
    %245 = vmatprep.subr.mxu0 0.0
    %246 = vmatpush1.msra.mxu0 %v91
    %247 = vmatprep.subr.mxu0 0.0
    %248 = vmatpush1.msra.mxu0 0.0
    %249 = vmatprep.subr.mxu0 0.0
    %250 = vmatpush1.msra.mxu0 0.0
    %251 = vmatprep.subr.mxu0 0.0
    %252 = vmatpush1.msra.mxu0 0.0
    %253 = vmatprep.subr.mxu0 0.0
    %254 = vmatpush1.msra.mxu0 0.0
    %255 = vmatprep.subr.mxu0 0.0
    %256 = vmatpush1.msra.mxu0 0.0
    %257 = vmatprep.subr.mxu0 0.0
    %258 = vmatpush1.msra.mxu0 0.0
    %259 = vmatprep.subr.mxu0 0.0
    %260 = vmatpush1.msra.mxu0 0.0
    %261 = vmatprep.subr.mxu0 0.0
    %262 = vmatpush1.msra.mxu0 0.0
    %263 = vmatprep.subr.mxu0 0.0
    %264 = vmatpush1.msra.mxu0 0.0
    %265 = vmatprep.subr.mxu0 0.0
    %266 = vmatpush1.msra.mxu0 0.0
    %267 = vmatprep.subr.mxu0 0.0
    %268 = vmatpush1.msra.mxu0 0.0
    %269 = vmatprep.subr.mxu0 0.0
    %270 = vmatpush1.msra.mxu0 0.0
    %271 = vmatprep.subr.mxu0 0.0
    %272 = vmatpush1.msra.mxu0 0.0
    %273 = vmatprep.subr.mxu0 0.0
    %274 = vmatpush1.msra.mxu0 0.0
    %275 = vmatprep.subr.mxu0 0.0
    %276 = vmatpush1.msra.mxu0 0.0
    %277 = vmatprep.subr.mxu0 0.0
    %278 = vmatpush1.msra.mxu0 0.0
    %279 = vmatprep.mubr.f32.mxu0 0.0
    %280 = vmatmul.mubr.f32.gmra.mrb[0].mxu0 %v213
    %v281 = vpop.f32.mrb[0].mxu0
    %v282 = vadd.f32 0.0, %v281
    %v283 = vpop.f32.mrb[0].mxu0
    %284 = vdwg.mxu0
    %v285 = vadd.f32 %v214, %v282
    %v286 = vmax.f32 %v285, 0.0
    %287 = vst [vmem:[#allocation9] sm:$0xff] %v286
    %v288 = vld [vmem:[#allocation9 + $0x8] sm:$0xff]
    %289 = vmatprep.subr.mxu0 0.0
    %290 = vmatpush1.msra.mxu0 %v76
    %291 = vmatprep.subr.mxu0 0.0
    %292 = vmatpush1.msra.mxu0 %v77
    %293 = vmatprep.subr.mxu0 0.0
    %294 = vmatpush1.msra.mxu0 %v78
    %295 = vmatprep.subr.mxu0 0.0
    %296 = vmatpush1.msra.mxu0 %v79
    %297 = vmatprep.subr.mxu0 0.0
    %298 = vmatpush1.msra.mxu0 %v80
    %299 = vmatprep.subr.mxu0 0.0
    %300 = vmatpush1.msra.mxu0 %v81
    %301 = vmatprep.subr.mxu0 0.0
    %302 = vmatpush1.msra.mxu0 %v82
    %303 = vmatprep.subr.mxu0 0.0
    %304 = vmatpush1.msra.mxu0 %v83
    %305 = vmatprep.subr.mxu0 0.0
    %306 = vmatpush1.msra.mxu0 %v84
    %307 = vmatprep.subr.mxu0 0.0
    %308 = vmatpush1.msra.mxu0 %v85
    %309 = vmatprep.subr.mxu0 0.0
    %310 = vmatpush1.msra.mxu0 %v86
    %311 = vmatprep.subr.mxu0 0.0
    %312 = vmatpush1.msra.mxu0 %v87
    %313 = vmatprep.subr.mxu0 0.0
    %314 = vmatpush1.msra.mxu0 %v88
    %315 = vmatprep.subr.mxu0 0.0
    %316 = vmatpush1.msra.mxu0 %v89
    %317 = vmatprep.subr.mxu0 0.0
    %318 = vmatpush1.msra.mxu0 %v90
    %319 = vmatprep.subr.mxu0 0.0
    %320 = vmatpush1.msra.mxu0 %v91
    %321 = vmatprep.subr.mxu0 0.0
    %322 = vmatpush1.msra.mxu0 0.0
    %323 = vmatprep.subr.mxu0 0.0
    %324 = vmatpush1.msra.mxu0 0.0
    %325 = vmatprep.subr.mxu0 0.0
    %326 = vmatpush1.msra.mxu0 0.0
    %327 = vmatprep.subr.mxu0 0.0
    %328 = vmatpush1.msra.mxu0 0.0
    %329 = vmatprep.subr.mxu0 0.0
    %330 = vmatpush1.msra.mxu0 0.0
    %331 = vmatprep.subr.mxu0 0.0
    %332 = vmatpush1.msra.mxu0 0.0
    %333 = vmatprep.subr.mxu0 0.0
    %334 = vmatpush1.msra.mxu0 0.0
    %335 = vmatprep.subr.mxu0 0.0
    %336 = vmatpush1.msra.mxu0 0.0
    %337 = vmatprep.subr.mxu0 0.0
    %338 = vmatpush1.msra.mxu0 0.0
    %339 = vmatprep.subr.mxu0 0.0
    %340 = vmatpush1.msra.mxu0 0.0
    %341 = vmatprep.subr.mxu0 0.0
    %342 = vmatpush1.msra.mxu0 0.0
    %343 = vmatprep.subr.mxu0 0.0
    %344 = vmatpush1.msra.mxu0 0.0
    %345 = vmatprep.subr.mxu0 0.0
    %346 = vmatpush1.msra.mxu0 0.0
    %347 = vmatprep.subr.mxu0 0.0
    %348 = vmatpush1.msra.mxu0 0.0
    %349 = vmatprep.subr.mxu0 0.0
    %350 = vmatpush1.msra.mxu0 0.0
    %351 = vmatprep.subr.mxu0 0.0
    %352 = vmatpush1.msra.mxu0 0.0
    %353 = vmatprep.mubr.f32.mxu0 0.0
    %354 = vmatmul.mubr.f32.gmra.mrb[0].mxu0 %v286
    %v355 = vpop.f32.mrb[0].mxu0
    %v356 = vadd.f32 0.0, %v355
    %v357 = vpop.f32.mrb[0].mxu0
    %358 = vdwg.mxu0
    %v359 = vadd.f32 %v288, %v356
    %v360 = vmax.f32 %v359, 0.0
    %361 = vst [vmem:[#allocation9 + $0x8] sm:$0xff] %v360
    %v362 = vld [vmem:[#allocation9 + $0x10] sm:$0xff]
    %363 = vmatprep.subr.mxu0 0.0
    %364 = vmatpush1.msra.mxu0 %v76
    %365 = vmatprep.subr.mxu0 0.0
    %366 = vmatpush1.msra.mxu0 %v77
    %367 = vmatprep.subr.mxu0 0.0
    %368 = vmatpush1.msra.mxu0 %v78
    %369 = vmatprep.subr.mxu0 0.0
    %370 = vmatpush1.msra.mxu0 %v79
    %371 = vmatprep.subr.mxu0 0.0
    %372 = vmatpush1.msra.mxu0 %v80
    %373 = vmatprep.subr.mxu0 0.0
    %374 = vmatpush1.msra.mxu0 %v81
    %375 = vmatprep.subr.mxu0 0.0
    %376 = vmatpush1.msra.mxu0 %v82
    %377 = vmatprep.subr.mxu0 0.0
    %378 = vmatpush1.msra.mxu0 %v83
    %379 = vmatprep.subr.mxu0 0.0
    %380 = vmatpush1.msra.mxu0 %v84
    %381 = vmatprep.subr.mxu0 0.0
    %382 = vmatpush1.msra.mxu0 %v85
    %383 = vmatprep.subr.mxu0 0.0
    %384 = vmatpush1.msra.mxu0 %v86
    %385 = vmatprep.subr.mxu0 0.0
    %386 = vmatpush1.msra.mxu0 %v87
    %387 = vmatprep.subr.mxu0 0.0
    %388 = vmatpush1.msra.mxu0 %v88
    %389 = vmatprep.subr.mxu0 0.0
    %390 = vmatpush1.msra.mxu0 %v89
    %391 = vmatprep.subr.mxu0 0.0
    %392 = vmatpush1.msra.mxu0 %v90
    %393 = vmatprep.subr.mxu0 0.0
    %394 = vmatpush1.msra.mxu0 %v91
    %395 = vmatprep.subr.mxu0 0.0
    %396 = vmatpush1.msra.mxu0 0.0
    %397 = vmatprep.subr.mxu0 0.0
    %398 = vmatpush1.msra.mxu0 0.0
    %399 = vmatprep.subr.mxu0 0.0
    %400 = vmatpush1.msra.mxu0 0.0
    %401 = vmatprep.subr.mxu0 0.0
    %402 = vmatpush1.msra.mxu0 0.0
    %403 = vmatprep.subr.mxu0 0.0
    %404 = vmatpush1.msra.mxu0 0.0
    %405 = vmatprep.subr.mxu0 0.0
    %406 = vmatpush1.msra.mxu0 0.0
    %407 = vmatprep.subr.mxu0 0.0
    %408 = vmatpush1.msra.mxu0 0.0
    %409 = vmatprep.subr.mxu0 0.0
    %410 = vmatpush1.msra.mxu0 0.0
    %411 = vmatprep.subr.mxu0 0.0
    %412 = vmatpush1.msra.mxu0 0.0
    %413 = vmatprep.subr.mxu0 0.0
    %414 = vmatpush1.msra.mxu0 0.0
    %415 = vmatprep.subr.mxu0 0.0
    %416 = vmatpush1.msra.mxu0 0.0
    %417 = vmatprep.subr.mxu0 0.0
    %418 = vmatpush1.msra.mxu0 0.0
    %419 = vmatprep.subr.mxu0 0.0
    %420 = vmatpush1.msra.mxu0 0.0
    %421 = vmatprep.subr.mxu0 0.0
    %422 = vmatpush1.msra.mxu0 0.0
    %423 = vmatprep.subr.mxu0 0.0
    %424 = vmatpush1.msra.mxu0 0.0
    %425 = vmatprep.subr.mxu0 0.0
    %426 = vmatpush1.msra.mxu0 0.0
    %427 = vmatprep.mubr.f32.mxu0 0.0
    %428 = vmatmul.mubr.f32.gmra.mrb[0].mxu0 %v360
    %v429 = vpop.f32.mrb[0].mxu0
    %v430 = vadd.f32 0.0, %v429
    %v431 = vpop.f32.mrb[0].mxu0
    %432 = vdwg.mxu0
    %v433 = vadd.f32 %v362, %v430
    %v434 = vmax.f32 %v433, 0.0
    %435 = vst [vmem:[#allocation9 + $0x10] sm:$0xff] %v434
    %v436 = vld [vmem:[#allocation9 + $0x18] sm:$0xff]
    %437 = vmatprep.subr.mxu0 0.0
    %438 = vmatpush1.msra.mxu0 %v76
    %439 = vmatprep.subr.mxu0 0.0
    %440 = vmatpush1.msra.mxu0 %v77
    %441 = vmatprep.subr.mxu0 0.0
    %442 = vmatpush1.msra.mxu0 %v78
    %443 = vmatprep.subr.mxu0 0.0
    %444 = vmatpush1.msra.mxu0 %v79
    %445 = vmatprep.subr.mxu0 0.0
    %446 = vmatpush1.msra.mxu0 %v80
    %447 = vmatprep.subr.mxu0 0.0
    %448 = vmatpush1.msra.mxu0 %v81
    %449 = vmatprep.subr.mxu0 0.0
    %450 = vmatpush1.msra.mxu0 %v82
    %451 = vmatprep.subr.mxu0 0.0
    %452 = vmatpush1.msra.mxu0 %v83
    %453 = vmatprep.subr.mxu0 0.0
    %454 = vmatpush1.msra.mxu0 %v84
    %455 = vmatprep.subr.mxu0 0.0
    %456 = vmatpush1.msra.mxu0 %v85
    %457 = vmatprep.subr.mxu0 0.0
    %458 = vmatpush1.msra.mxu0 %v86
    %459 = vmatprep.subr.mxu0 0.0
    %460 = vmatpush1.msra.mxu0 %v87
    %461 = vmatprep.subr.mxu0 0.0
    %462 = vmatpush1.msra.mxu0 %v88
    %463 = vmatprep.subr.mxu0 0.0
    %464 = vmatpush1.msra.mxu0 %v89
    %465 = vmatprep.subr.mxu0 0.0
    %466 = vmatpush1.msra.mxu0 %v90
    %467 = vmatprep.subr.mxu0 0.0
    %468 = vmatpush1.msra.mxu0 %v91
    %469 = vmatprep.subr.mxu0 0.0
    %470 = vmatpush1.msra.mxu0 0.0
    %471 = vmatprep.subr.mxu0 0.0
    %472 = vmatpush1.msra.mxu0 0.0
    %473 = vmatprep.subr.mxu0 0.0
    %474 = vmatpush1.msra.mxu0 0.0
    %475 = vmatprep.subr.mxu0 0.0
    %476 = vmatpush1.msra.mxu0 0.0
    %477 = vmatprep.subr.mxu0 0.0
    %478 = vmatpush1.msra.mxu0 0.0
    %479 = vmatprep.subr.mxu0 0.0
    %480 = vmatpush1.msra.mxu0 0.0
    %481 = vmatprep.subr.mxu0 0.0
    %482 = vmatpush1.msra.mxu0 0.0
    %483 = vmatprep.subr.mxu0 0.0
    %484 = vmatpush1.msra.mxu0 0.0
    %485 = vmatprep.subr.mxu0 0.0
    %486 = vmatpush1.msra.mxu0 0.0
    %487 = vmatprep.subr.mxu0 0.0
    %488 = vmatpush1.msra.mxu0 0.0
    %489 = vmatprep.subr.mxu0 0.0
    %490 = vmatpush1.msra.mxu0 0.0
    %491 = vmatprep.subr.mxu0 0.0
    %492 = vmatpush1.msra.mxu0 0.0
    %493 = vmatprep.subr.mxu0 0.0
    %494 = vmatpush1.msra.mxu0 0.0
    %495 = vmatprep.subr.mxu0 0.0
    %496 = vmatpush1.msra.mxu0 0.0
    %497 = vmatprep.subr.mxu0 0.0
    %498 = vmatpush1.msra.mxu0 0.0
    %499 = vmatprep.subr.mxu0 0.0
    %500 = vmatpush1.msra.mxu0 0.0
    %501 = vmatprep.mubr.f32.mxu0 0.0
    %502 = vmatmul.mubr.f32.gmra.mrb[0].mxu0 %v434
    %v503 = vpop.f32.mrb[0].mxu0
    %v504 = vadd.f32 0.0, %v503
    %v505 = vpop.f32.mrb[0].mxu0
    %506 = vdwg.mxu0
    %v507 = vadd.f32 %v436, %v504
    %v508 = vmax.f32 %v507, 0.0
    %509 = vst [vmem:[#allocation9 + $0x18] sm:$0xff] %v508
    %v510 = vld [vmem:[#allocation9 + $0x20] sm:$0xff]
    %511 = vmatprep.subr.mxu0 0.0
    %512 = vmatpush1.msra.mxu0 %v76
    %513 = vmatprep.subr.mxu0 0.0
    %514 = vmatpush1.msra.mxu0 %v77
    %515 = vmatprep.subr.mxu0 0.0
    %516 = vmatpush1.msra.mxu0 %v78
    %517 = vmatprep.subr.mxu0 0.0
    %518 = vmatpush1.msra.mxu0 %v79
    %519 = vmatprep.subr.mxu0 0.0
    %520 = vmatpush1.msra.mxu0 %v80
    %521 = vmatprep.subr.mxu0 0.0
    %522 = vmatpush1.msra.mxu0 %v81
    %523 = vmatprep.subr.mxu0 0.0
    %524 = vmatpush1.msra.mxu0 %v82
    %525 = vmatprep.subr.mxu0 0.0
    %526 = vmatpush1.msra.mxu0 %v83
    %527 = vmatprep.subr.mxu0 0.0
    %528 = vmatpush1.msra.mxu0 %v84
    %529 = vmatprep.subr.mxu0 0.0
    %530 = vmatpush1.msra.mxu0 %v85
    %531 = vmatprep.subr.mxu0 0.0
    %532 = vmatpush1.msra.mxu0 %v86
    %533 = vmatprep.subr.mxu0 0.0
    %534 = vmatpush1.msra.mxu0 %v87
    %535 = vmatprep.subr.mxu0 0.0
    %536 = vmatpush1.msra.mxu0 %v88
    %537 = vmatprep.subr.mxu0 0.0
    %538 = vmatpush1.msra.mxu0 %v89
    %539 = vmatprep.subr.mxu0 0.0
    %540 = vmatpush1.msra.mxu0 %v90
    %541 = vmatprep.subr.mxu0 0.0
    %542 = vmatpush1.msra.mxu0 %v91
    %543 = vmatprep.subr.mxu0 0.0
    %544 = vmatpush1.msra.mxu0 0.0
    %545 = vmatprep.subr.mxu0 0.0
    %546 = vmatpush1.msra.mxu0 0.0
    %547 = vmatprep.subr.mxu0 0.0
    %548 = vmatpush1.msra.mxu0 0.0
    %549 = vmatprep.subr.mxu0 0.0
    %550 = vmatpush1.msra.mxu0 0.0
    %551 = vmatprep.subr.mxu0 0.0
    %552 = vmatpush1.msra.mxu0 0.0
    %553 = vmatprep.subr.mxu0 0.0
    %554 = vmatpush1.msra.mxu0 0.0
    %555 = vmatprep.subr.mxu0 0.0
    %556 = vmatpush1.msra.mxu0 0.0
    %557 = vmatprep.subr.mxu0 0.0
    %558 = vmatpush1.msra.mxu0 0.0
    %559 = vmatprep.subr.mxu0 0.0
    %560 = vmatpush1.msra.mxu0 0.0
    %561 = vmatprep.subr.mxu0 0.0
    %562 = vmatpush1.msra.mxu0 0.0
    %563 = vmatprep.subr.mxu0 0.0
    %564 = vmatpush1.msra.mxu0 0.0
    %565 = vmatprep.subr.mxu0 0.0
    %566 = vmatpush1.msra.mxu0 0.0
    %567 = vmatprep.subr.mxu0 0.0
    %568 = vmatpush1.msra.mxu0 0.0
    %569 = vmatprep.subr.mxu0 0.0
    %570 = vmatpush1.msra.mxu0 0.0
    %571 = vmatprep.subr.mxu0 0.0
    %572 = vmatpush1.msra.mxu0 0.0
    %573 = vmatprep.subr.mxu0 0.0
    %574 = vmatpush1.msra.mxu0 0.0
    %575 = vmatprep.mubr.f32.mxu0 0.0
    %576 = vmatmul.mubr.f32.gmra.mrb[0].mxu0 %v508
    %v577 = vpop.f32.mrb[0].mxu0
    %v578 = vadd.f32 0.0, %v577
    %v579 = vpop.f32.mrb[0].mxu0
    %580 = vdwg.mxu0
    %v581 = vadd.f32 %v510, %v578
    %v582 = vmax.f32 %v581, 0.0
    %583 = vst [vmem:[#allocation9 + $0x20] sm:$0xff] %v582
    %v584 = vld [vmem:[#allocation9 + $0x28] sm:$0xff]
    %585 = vmatprep.subr.mxu0 0.0
    %586 = vmatpush1.msra.mxu0 %v76
    %587 = vmatprep.subr.mxu0 0.0
    %588 = vmatpush1.msra.mxu0 %v77
    %589 = vmatprep.subr.mxu0 0.0
    %590 = vmatpush1.msra.mxu0 %v78
    %591 = vmatprep.subr.mxu0 0.0
    %592 = vmatpush1.msra.mxu0 %v79
    %593 = vmatprep.subr.mxu0 0.0
    %594 = vmatpush1.msra.mxu0 %v80
    %595 = vmatprep.subr.mxu0 0.0
    %596 = vmatpush1.msra.mxu0 %v81
    %597 = vmatprep.subr.mxu0 0.0
    %598 = vmatpush1.msra.mxu0 %v82
    %599 = vmatprep.subr.mxu0 0.0
    %600 = vmatpush1.msra.mxu0 %v83
    %601 = vmatprep.subr.mxu0 0.0
    %602 = vmatpush1.msra.mxu0 %v84
    %603 = vmatprep.subr.mxu0 0.0
    %604 = vmatpush1.msra.mxu0 %v85
    %605 = vmatprep.subr.mxu0 0.0
    %606 = vmatpush1.msra.mxu0 %v86
    %607 = vmatprep.subr.mxu0 0.0
    %608 = vmatpush1.msra.mxu0 %v87
    %609 = vmatprep.subr.mxu0 0.0
    %610 = vmatpush1.msra.mxu0 %v88
    %611 = vmatprep.subr.mxu0 0.0
    %612 = vmatpush1.msra.mxu0 %v89
    %613 = vmatprep.subr.mxu0 0.0
    %614 = vmatpush1.msra.mxu0 %v90
    %615 = vmatprep.subr.mxu0 0.0
    %616 = vmatpush1.msra.mxu0 %v91
    %617 = vmatprep.subr.mxu0 0.0
    %618 = vmatpush1.msra.mxu0 0.0
    %619 = vmatprep.subr.mxu0 0.0
    %620 = vmatpush1.msra.mxu0 0.0
    %621 = vmatprep.subr.mxu0 0.0
    %622 = vmatpush1.msra.mxu0 0.0
    %623 = vmatprep.subr.mxu0 0.0
    %624 = vmatpush1.msra.mxu0 0.0
    %625 = vmatprep.subr.mxu0 0.0
    %626 = vmatpush1.msra.mxu0 0.0
    %627 = vmatprep.subr.mxu0 0.0
    %628 = vmatpush1.msra.mxu0 0.0
    %629 = vmatprep.subr.mxu0 0.0
    %630 = vmatpush1.msra.mxu0 0.0
    %631 = vmatprep.subr.mxu0 0.0
    %632 = vmatpush1.msra.mxu0 0.0
    %633 = vmatprep.subr.mxu0 0.0
    %634 = vmatpush1.msra.mxu0 0.0
    %635 = vmatprep.subr.mxu0 0.0
    %636 = vmatpush1.msra.mxu0 0.0
    %637 = vmatprep.subr.mxu0 0.0
    %638 = vmatpush1.msra.mxu0 0.0
    %639 = vmatprep.subr.mxu0 0.0
    %640 = vmatpush1.msra.mxu0 0.0
    %641 = vmatprep.subr.mxu0 0.0
    %642 = vmatpush1.msra.mxu0 0.0
    %643 = vmatprep.subr.mxu0 0.0
    %644 = vmatpush1.msra.mxu0 0.0
    %645 = vmatprep.subr.mxu0 0.0
    %646 = vmatpush1.msra.mxu0 0.0
    %647 = vmatprep.subr.mxu0 0.0
    %648 = vmatpush1.msra.mxu0 0.0
    %649 = vmatprep.mubr.f32.mxu0 0.0
    %650 = vmatmul.mubr.f32.gmra.mrb[0].mxu0 %v582
    %v651 = vpop.f32.mrb[0].mxu0
    %v652 = vadd.f32 0.0, %v651
    %v653 = vpop.f32.mrb[0].mxu0
    %654 = vdwg.mxu0
    %v655 = vadd.f32 %v584, %v652
    %v656 = vmax.f32 %v655, 0.0
    %657 = vst [vmem:[#allocation9 + $0x28] sm:$0xff] %v656
    %v658 = vld [vmem:[#allocation9 + $0x30] sm:$0xff]
    %659 = vmatprep.subr.mxu0 0.0
    %660 = vmatpush1.msra.mxu0 %v76
    %661 = vmatprep.subr.mxu0 0.0
    %662 = vmatpush1.msra.mxu0 %v77
    %663 = vmatprep.subr.mxu0 0.0
    %664 = vmatpush1.msra.mxu0 %v78
    %665 = vmatprep.subr.mxu0 0.0
    %666 = vmatpush1.msra.mxu0 %v79
    %667 = vmatprep.subr.mxu0 0.0
    %668 = vmatpush1.msra.mxu0 %v80
    %669 = vmatprep.subr.mxu0 0.0
    %670 = vmatpush1.msra.mxu0 %v81
    %671 = vmatprep.subr.mxu0 0.0
    %672 = vmatpush1.msra.mxu0 %v82
    %673 = vmatprep.subr.mxu0 0.0
    %674 = vmatpush1.msra.mxu0 %v83
    %675 = vmatprep.subr.mxu0 0.0
    %676 = vmatpush1.msra.mxu0 %v84
    %677 = vmatprep.subr.mxu0 0.0
    %678 = vmatpush1.msra.mxu0 %v85
    %679 = vmatprep.subr.mxu0 0.0
    %680 = vmatpush1.msra.mxu0 %v86
    %681 = vmatprep.subr.mxu0 0.0
    %682 = vmatpush1.msra.mxu0 %v87
    %683 = vmatprep.subr.mxu0 0.0
    %684 = vmatpush1.msra.mxu0 %v88
    %685 = vmatprep.subr.mxu0 0.0
    %686 = vmatpush1.msra.mxu0 %v89
    %687 = vmatprep.subr.mxu0 0.0
    %688 = vmatpush1.msra.mxu0 %v90
    %689 = vmatprep.subr.mxu0 0.0
    %690 = vmatpush1.msra.mxu0 %v91
    %691 = vmatprep.subr.mxu0 0.0
    %692 = vmatpush1.msra.mxu0 0.0
    %693 = vmatprep.subr.mxu0 0.0
    %694 = vmatpush1.msra.mxu0 0.0
    %695 = vmatprep.subr.mxu0 0.0
    %696 = vmatpush1.msra.mxu0 0.0
    %697 = vmatprep.subr.mxu0 0.0
    %698 = vmatpush1.msra.mxu0 0.0
    %699 = vmatprep.subr.mxu0 0.0
    %700 = vmatpush1.msra.mxu0 0.0
    %701 = vmatprep.subr.mxu0 0.0
    %702 = vmatpush1.msra.mxu0 0.0
    %703 = vmatprep.subr.mxu0 0.0
    %704 = vmatpush1.msra.mxu0 0.0
    %705 = vmatprep.subr.mxu0 0.0
    %706 = vmatpush1.msra.mxu0 0.0
    %707 = vmatprep.subr.mxu0 0.0
    %708 = vmatpush1.msra.mxu0 0.0
    %709 = vmatprep.subr.mxu0 0.0
    %710 = vmatpush1.msra.mxu0 0.0
    %711 = vmatprep.subr.mxu0 0.0
    %712 = vmatpush1.msra.mxu0 0.0
    %713 = vmatprep.subr.mxu0 0.0
    %714 = vmatpush1.msra.mxu0 0.0
    %715 = vmatprep.subr.mxu0 0.0
    %716 = vmatpush1.msra.mxu0 0.0
    %717 = vmatprep.subr.mxu0 0.0
    %718 = vmatpush1.msra.mxu0 0.0
    %719 = vmatprep.subr.mxu0 0.0
    %720 = vmatpush1.msra.mxu0 0.0
    %721 = vmatprep.subr.mxu0 0.0
    %722 = vmatpush1.msra.mxu0 0.0
    %723 = vmatprep.mubr.f32.mxu0 0.0
    %724 = vmatmul.mubr.f32.gmra.mrb[0].mxu0 %v656
    %v725 = vpop.f32.mrb[0].mxu0
    %v726 = vadd.f32 0.0, %v725
    %v727 = vpop.f32.mrb[0].mxu0
    %728 = vdwg.mxu0
    %v729 = vadd.f32 %v658, %v726
    %v730 = vmax.f32 %v729, 0.0
    %731 = vst [vmem:[#allocation9 + $0x30] sm:$0xff] %v730
    %v732 = vld [vmem:[#allocation9 + $0x38] sm:$0xff]
    %733 = vmatprep.subr.mxu0 0.0
    %734 = vmatpush1.msra.mxu0 %v76
    %735 = vmatprep.subr.mxu0 0.0
    %736 = vmatpush1.msra.mxu0 %v77
    %737 = vmatprep.subr.mxu0 0.0
    %738 = vmatpush1.msra.mxu0 %v78
    %739 = vmatprep.subr.mxu0 0.0
    %740 = vmatpush1.msra.mxu0 %v79
    %741 = vmatprep.subr.mxu0 0.0
    %742 = vmatpush1.msra.mxu0 %v80
    %743 = vmatprep.subr.mxu0 0.0
    %744 = vmatpush1.msra.mxu0 %v81
    %745 = vmatprep.subr.mxu0 0.0
    %746 = vmatpush1.msra.mxu0 %v82
    %747 = vmatprep.subr.mxu0 0.0
    %748 = vmatpush1.msra.mxu0 %v83
    %749 = vmatprep.subr.mxu0 0.0
    %750 = vmatpush1.msra.mxu0 %v84
    %751 = vmatprep.subr.mxu0 0.0
    %752 = vmatpush1.msra.mxu0 %v85
    %753 = vmatprep.subr.mxu0 0.0
    %754 = vmatpush1.msra.mxu0 %v86
    %755 = vmatprep.subr.mxu0 0.0
    %756 = vmatpush1.msra.mxu0 %v87
    %757 = vmatprep.subr.mxu0 0.0
    %758 = vmatpush1.msra.mxu0 %v88
    %759 = vmatprep.subr.mxu0 0.0
    %760 = vmatpush1.msra.mxu0 %v89
    %761 = vmatprep.subr.mxu0 0.0
    %762 = vmatpush1.msra.mxu0 %v90
    %763 = vmatprep.subr.mxu0 0.0
    %764 = vmatpush1.msra.mxu0 %v91
    %765 = vmatprep.subr.mxu0 0.0
    %766 = vmatpush1.msra.mxu0 0.0
    %767 = vmatprep.subr.mxu0 0.0
    %768 = vmatpush1.msra.mxu0 0.0
    %769 = vmatprep.subr.mxu0 0.0
    %770 = vmatpush1.msra.mxu0 0.0
    %771 = vmatprep.subr.mxu0 0.0
    %772 = vmatpush1.msra.mxu0 0.0
    %773 = vmatprep.subr.mxu0 0.0
    %774 = vmatpush1.msra.mxu0 0.0
    %775 = vmatprep.subr.mxu0 0.0
    %776 = vmatpush1.msra.mxu0 0.0
    %777 = vmatprep.subr.mxu0 0.0
    %778 = vmatpush1.msra.mxu0 0.0
    %779 = vmatprep.subr.mxu0 0.0
    %780 = vmatpush1.msra.mxu0 0.0
    %781 = vmatprep.subr.mxu0 0.0
    %782 = vmatpush1.msra.mxu0 0.0
    %783 = vmatprep.subr.mxu0 0.0
    %784 = vmatpush1.msra.mxu0 0.0
    %785 = vmatprep.subr.mxu0 0.0
    %786 = vmatpush1.msra.mxu0 0.0
    %787 = vmatprep.subr.mxu0 0.0
    %788 = vmatpush1.msra.mxu0 0.0
    %789 = vmatprep.subr.mxu0 0.0
    %790 = vmatpush1.msra.mxu0 0.0
    %791 = vmatprep.subr.mxu0 0.0
    %792 = vmatpush1.msra.mxu0 0.0
    %793 = vmatprep.subr.mxu0 0.0
    %794 = vmatpush1.msra.mxu0 0.0
    %795 = vmatprep.subr.mxu0 0.0
    %796 = vmatpush1.msra.mxu0 0.0
    %797 = vmatprep.mubr.f32.mxu0 0.0
    %798 = vmatmul.mubr.f32.gmra.mrb[0].mxu0 %v730
    %v799 = vpop.f32.mrb[0].mxu0
    %v800 = vadd.f32 0.0, %v799
    %v801 = vpop.f32.mrb[0].mxu0
    %802 = vdwg.mxu0
    %v803 = vadd.f32 %v732, %v800
    %v804 = vmax.f32 %v803, 0.0
    %805 = vst [vmem:[#allocation9 + $0x38] sm:$0xff] %v804
    %806 = vst [vmem:[#allocation2] sm:$0xff] %v804
    // Predicated region
    $region30: #{tpu_custom_call.1} parent=1 // pred_check
      _
    $region31: #{tpu_custom_call.1} parent=1 // pred_check_branch
      %808 = sbr.rel (0) target = $region33
    $region32: #{tpu_custom_call.1} parent=1 // pred_region
      %s810 = ssub.s32 1024, 1024
      %811 = vsyncadd [#allocation5], %s810
      %s812 = sshll.u32 [#allocation9], 4
      %s813 = int_to_ptr.vmem [resolvable:$true] %s812
      %818 = dma.vmem_to_hbm [thread:$0]  %s813, 1024, %s3, [#allocation5], 128, 128, 8
    $region33: #{tpu_custom_call.1} parent=1 // pred_fallthru
      _
    // Predicated region
    $region34: #{tpu_custom_call.1} parent=1 // pred_check
      _
    $region35: #{tpu_custom_call.1} parent=1 // pred_check_branch
      %820 = sbr.rel (0) target = $region37
    $region36: #{tpu_custom_call.1} parent=1 // pred_region
      %821 = dma.done [#allocation5], 1024
    $region37: #{tpu_custom_call.1} parent=1 // pred_fallthru
      _
    %822 = vsyncpa [#allocation4], 1
    %823 = vsyncpa [#allocation7], 1
    %824 = vsyncpa [#allocation5], 1

</llo_original>
